<compile_context>
chip_gen: v6e
topology: v6e:2x2x1
jax: 0.10.0
libtpu: 0.0.40
codegen_flags: <defaults>
</compile_context>

<pallas_src>
import functools

import jax
import jax.numpy as jnp
from jax import lax
from jax.experimental import pallas as pl
from jax.experimental.pallas import tpu as pltpu


# ----------------------------- small helpers -----------------------------

def _round_up(x, m):
    return (x + m - 1) // m * m


def _cdiv(a, b):
    return -(-a // b)


def _auto_pad_channels(c):
    """Lane-align channel width when overhead is modest (<~33%).

    The kernel is HBM-bound at realistic widths, so tiny channel counts are left
    unpadded (padding 4 -> 128 would multiply HBM traffic 32x for no gain)."""
    if c % 128 == 0 or c < 96:
        return c
    return _round_up(c, 128)


def _vmem_limit_bytes():
    """Per-generation VMEM limit: ~3/4 of physical (96 MiB on v5e/v6e, 48 MiB on v7x)."""
    try:
        cap = int(pltpu.get_tpu_info().vmem_capacity_bytes)
    except Exception:
        return 48 * 1024 * 1024          # safe everywhere (v7x has 64 MiB physical)
    return max(32 * 1024 * 1024, (cap * 3) // 4)


# ------------------------------- the kernel -------------------------------

def _wavenet_kernel(dilation, kernel_size, Hp, mm_dtype,
                    x_ref, wc_ref, bc_ref, wrs_ref, brs_ref,
                    res_ref, skip_ref, carry_ref):
    # x_ref:     (Bt, Tt, Cin)        input tile (channels-last, in_dtype)
    # wc_ref:    (K, Cin, Cout)       causal-conv taps (zero-padded channels)
    # bc_ref:    (1, Cout)            causal-conv bias (f32)
    # wrs_ref:   (Cout, 2*Cin)        [residual | skip] 1x1 weights, fused
    # brs_ref:   (1, 2*Cin)           [residual | skip] biases (f32)
    # res_ref:   (Bt, Tt, Cin)
    # skip_ref:  (Bt, Tt, Cin)
    # carry_ref: (Bt, Hp, Cin)        last Hp timesteps seen so far (Hp = halo rounded to 8)
    t = pl.program_id(1)
    Bt, Tt, Cin = x_ref.shape
    Cout = wc_ref.shape[-1]
    H = (kernel_size - 1) * dilation          # true causal halo
    rows = Bt * Tt

    x = x_ref[...]                            # (Bt, Tt, Cin) in_dtype
    xm = x.astype(mm_dtype)                   # cast ONCE for all MXU uses

    if H > 0:
        @pl.when(t == 0)
        def _():
            # t < 0 inputs are zero (PyTorch causal padding).
            carry_ref[...] = jnp.zeros_like(carry_ref)

        # Carry extent Hp is a multiple of 8 sublanes -> concat never repacks x.
        xh = jnp.concatenate([carry_ref[...], xm], axis=1)    # (Bt, Hp+Tt, Cin)

        # Update the carry for the next time tile.  When the tile covers the halo,
        # write it straight from x (shorter dependence chain); otherwise fall back
        # to slicing the concatenated buffer (correct for Tt < Hp).
        if Tt >= Hp:
            carry_ref[...] = xm[:, Tt - Hp:, :]
        else:
            carry_ref[...] = xh[:, Tt:, :]
        base = Hp - H
    else:
        xh = xm
        base = 0

    # Tap k reads x[t - (K-1-k)*dilation]; K accumulating dots, no duplicated xcat.
    acc = jnp.zeros((rows, Cout), jnp.float32)
    for k in range(kernel_size):
        start = base + k * dilation                             # static, in [0, Hp]
        tap = xh[:, start:start + Tt, :].reshape(rows, Cin)
        acc = acc + jnp.dot(tap, wc_ref[k], preferred_element_type=jnp.float32)
    out = jnp.tanh(acc + bc_ref[...])                           # (rows, Cout) f32

    # Residual and skip 1x1 convs fused into one matmul, then a lane split.
    y = jnp.dot(out.astype(mm_dtype), wrs_ref[...],
                preferred_element_type=jnp.float32) + brs_ref[...]
    res = y[:, :Cin] + x.reshape(rows, Cin).astype(jnp.float32)
    skp = y[:, Cin:]

    res_ref[...] = res.reshape(Bt, Tt, Cin).astype(res_ref.dtype)
    skip_ref[...] = skp.reshape(Bt, Tt, Cin).astype(skip_ref.dtype)


# ------------------------------- the wrapper -------------------------------

def wavenet_block(x_nct, Wc, bc, Wr, br, Ws, bs, dilation, *,
                  t_tile=None, b_tile=1, mm_dtype=jnp.bfloat16,
                  in_dtype=None, out_dtype=jnp.float32,
                  pad_channels_to=None, in_buffers=2):
    """WaveNetBlock forward.  x_nct: (B, Cin, T) NCW.  Returns (residual, skip) in NCW.

    mm_dtype / in_dtype default to bf16 (fast inference path); pass float32 for a
    bit-faithful check.  out_dtype can be set to bf16 to halve output HBM traffic.
    """
    B, Cin, T = x_nct.shape
    Cout, Cin_w, K = Wc.shape
    assert Cin_w == Cin and B % b_tile == 0
    H = (K - 1) * dilation
    Hp = _round_up(H, 8) if H > 0 else 8      # carry sublane extent (8-aligned)

    if in_dtype is None:
        in_dtype = mm_dtype

    # ---- channel padding (lane alignment) ----
    if pad_channels_to is not None:
        Cin_p = _round_up(Cin, pad_channels_to)
        Cout_p = _round_up(Cout, pad_channels_to)
    else:
        Cin_p = _auto_pad_channels(Cin)
        Cout_p = _auto_pad_channels(Cout)

    # ---- per-generation VMEM budget and time-tile sizing ----
    vmem_limit = _vmem_limit_bytes()
    in_b = jnp.dtype(in_dtype).itemsize
    out_b = jnp.dtype(out_dtype).itemsize
    if t_tile is None:
        # bytes of pipelined activation buffers per timestep (input + 2 outputs, >=2 bufs)
        per_t = b_tile * Cin_p * (max(in_buffers, 2) * in_b + 4 * out_b)
        cap = (vmem_limit // 4) // per_t      # ~1/4 of VMEM for pipelined tiles
        cap = max(8, min(4096, (cap // 8) * 8))
        n_chunks = max(1, _cdiv(T, cap))
        t_tile = _round_up(_cdiv(T, n_chunks), 8)
    else:
        t_tile = _round_up(t_tile, 8)

    T_pad = _round_up(T, t_tile)
    nt = T_pad // t_tile

    # ---- layout glue (plain JAX): channels-last, zero-padded, packed weights ----
    x = jnp.transpose(x_nct, (0, 2, 1)).astype(in_dtype)                 # (B, T, Cin)
    x = jnp.pad(x, ((0, 0), (0, T_pad - T), (0, Cin_p - Cin)))

    wc = jnp.zeros((K, Cin_p, Cout_p), mm_dtype)
    wc = wc.at[:, :Cin, :Cout].set(jnp.transpose(Wc, (2, 1, 0)).astype(mm_dtype))
    bc_ = jnp.zeros((1, Cout_p), jnp.float32).at[0, :Cout].set(bc.astype(jnp.float32))

    wrs = jnp.zeros((Cout_p, 2 * Cin_p), mm_dtype)
    wrs = wrs.at[:Cout, :Cin].set(jnp.transpose(Wr[:, :, 0]).astype(mm_dtype))
    wrs = wrs.at[:Cout, Cin_p:Cin_p + Cin].set(jnp.transpose(Ws[:, :, 0]).astype(mm_dtype))
    brs = jnp.zeros((1, 2 * Cin_p), jnp.float32)
    brs = brs.at[0, :Cin].set(br.astype(jnp.float32))
    brs = brs.at[0, Cin_p:Cin_p + Cin].set(bs.astype(jnp.float32))

    kernel = functools.partial(_wavenet_kernel, dilation, K, Hp, mm_dtype)

    in_spec_kwargs = {}
    if in_buffers != 2:
        in_spec_kwargs["pipeline_mode"] = pl.Buffered(in_buffers)
    x_spec = pl.BlockSpec((b_tile, t_tile, Cin_p), lambda b, t: (b, t, 0), **in_spec_kwargs)
    out_spec = pl.BlockSpec((b_tile, t_tile, Cin_p), lambda b, t: (b, t, 0))

    res, skip = pl.pallas_call(
        kernel,
        out_shape=(jax.ShapeDtypeStruct((B, T_pad, Cin_p), out_dtype),
                   jax.ShapeDtypeStruct((B, T_pad, Cin_p), out_dtype)),
        grid_spec=pltpu.PrefetchScalarGridSpec(
            num_scalar_prefetch=0,
            grid=(B // b_tile, nt),
            in_specs=[
                x_spec,
                pl.BlockSpec((K, Cin_p, Cout_p), lambda b, t: (0, 0, 0)),
                pl.BlockSpec((1, Cout_p), lambda b, t: (0, 0)),
                pl.BlockSpec((Cout_p, 2 * Cin_p), lambda b, t: (0, 0)),
                pl.BlockSpec((1, 2 * Cin_p), lambda b, t: (0, 0)),
            ],
            out_specs=(out_spec, out_spec),
            scratch_shapes=[pltpu.VMEM((b_tile, Hp, Cin_p), mm_dtype)],
        ),
        compiler_params=pltpu.CompilerParams(
            # Batch tiles are independent (megacore-shardable); time must stay
            # sequential because of the causal-halo carry.
            dimension_semantics=("parallel", "arbitrary"),
            vmem_limit_bytes=vmem_limit,
        ),
    )(x, wc, bc_, wrs, brs)

    res = jnp.transpose(res[:, :T, :Cin], (0, 2, 1))
    skip = jnp.transpose(skip[:, :T, :Cin], (0, 2, 1))
    return res, skip


# ------------------------------- reference -------------------------------

def reference(x_nct, Wc, bc, Wr, br, Ws, bs, dilation):
    """Pure-JAX reference matching the PyTorch forward exactly (NCW)."""
    K = Wc.shape[2]
    P = (K - 1) * dilation
    y = lax.conv_general_dilated(
        x_nct, Wc, window_strides=(1,), padding=[(P, P)],
        rhs_dilation=(dilation,), dimension_numbers=('NCH', 'OIH', 'NCH'))
    y = y + bc[None, :, None]
    if P > 0:
        y = y[:, :, :-P]                               # causal crop
    out = jnp.tanh(y)
    res = jnp.einsum('io,bot->bit', Wr[:, :, 0], out) + br[None, :, None] + x_nct
    skp = jnp.einsum('io,bot->bit', Ws[:, :, 0], out) + bs[None, :, None]
    return res, skp


if __name__ == "__main__":
    B, Cin, Cout, K, DIL = 2, 4, 8, 3, 2

    key = jax.random.PRNGKey(0)
    ks = jax.random.split(key, 7)
    Wc = jax.random.normal(ks[1], (Cout, Cin, K), jnp.float32) * 0.3
    bc = jax.random.normal(ks[2], (Cout,), jnp.float32) * 0.1
    Wr = jax.random.normal(ks[3], (Cin, Cout, 1), jnp.float32) * 0.3
    br = jax.random.normal(ks[4], (Cin,), jnp.float32) * 0.1
    Ws = jax.random.normal(ks[5], (Cin, Cout, 1), jnp.float32) * 0.3
    bs = jax.random.normal(ks[6], (Cin,), jnp.float32) * 0.1

    # --- 1) single time tile, f32 MXU path: strict correctness ---
    T = 16
    x = jax.random.normal(ks[0], (B, Cin, T), jnp.float32)
    res, skip = wavenet_block(x, Wc, bc, Wr, br, Ws, bs, DIL, mm_dtype=jnp.float32)
    jax.block_until_ready((res, skip))
    res_ref, skip_ref = reference(x, Wc, bc, Wr, br, Ws, bs, DIL)
    assert res.shape == (B, Cin, T) and skip.shape == (B, Cin, T)
    assert jnp.allclose(res, res_ref, atol=1e-3, rtol=1e-3)
    assert jnp.allclose(skip, skip_ref, atol=1e-3, rtol=1e-3)

    # --- 2) multiple time tiles: exercises the causal-halo carry across grid steps ---
    T2 = 64
    x2 = jax.random.normal(jax.random.PRNGKey(1), (B, Cin, T2), jnp.float32)
    r2, s2 = wavenet_block(x2, Wc, bc, Wr, br, Ws, bs, DIL, t_tile=16, mm_dtype=jnp.float32)
    jax.block_until_ready((r2, s2))
    r2_ref, s2_ref = reference(x2, Wc, bc, Wr, br, Ws, bs, DIL)
    assert jnp.allclose(r2, r2_ref, atol=1e-3, rtol=1e-3)
    assert jnp.allclose(s2, s2_ref, atol=1e-3, rtol=1e-3)

    # --- 3) T not divisible by the tile: exercises time padding + halo carry ---
    T3 = 50
    x3 = jax.random.normal(jax.random.PRNGKey(2), (B, Cin, T3), jnp.float32)
    r3, s3 = wavenet_block(x3, Wc, bc, Wr, br, Ws, bs, DIL, t_tile=16, mm_dtype=jnp.float32)
    jax.block_until_ready((r3, s3))
    r3_ref, s3_ref = reference(x3, Wc, bc, Wr, br, Ws, bs, DIL)
    assert jnp.allclose(r3, r3_ref, atol=1e-3, rtol=1e-3)
    assert jnp.allclose(s3, s3_ref, atol=1e-3, rtol=1e-3)

    # --- 4) lane-padded channels path (forced): still exact in f32 ---
    r4, s4 = wavenet_block(x2, Wc, bc, Wr, br, Ws, bs, DIL, t_tile=16,
                           mm_dtype=jnp.float32, pad_channels_to=128)
    jax.block_until_ready((r4, s4))
    assert jnp.allclose(r4, r2_ref, atol=1e-3, rtol=1e-3)
    assert jnp.allclose(s4, s2_ref, atol=1e-3, rtol=1e-3)

    # --- 5) kernel_size=1 (no halo) path ---
    Wc1 = jax.random.normal(jax.random.PRNGKey(3), (Cout, Cin, 1), jnp.float32) * 0.3
    r5, s5 = wavenet_block(x2, Wc1, bc, Wr, br, Ws, bs, 1, t_tile=16, mm_dtype=jnp.float32)
    jax.block_until_ready((r5, s5))
    r5_ref, s5_ref = reference(x2, Wc1, bc, Wr, br, Ws, bs, 1)
    assert jnp.allclose(r5, r5_ref, atol=1e-3, rtol=1e-3)
    assert jnp.allclose(s5, s5_ref, atol=1e-3, rtol=1e-3)

    # --- 6) default fast path: bf16 MXU operands + bf16 input, f32 accumulation ---
    r6, s6 = wavenet_block(x2, Wc, bc, Wr, br, Ws, bs, DIL, t_tile=16)
    jax.block_until_ready((r6, s6))
    assert jnp.allclose(r6, r2_ref, atol=5e-2, rtol=5e-2)
    assert jnp.allclose(s6, s2_ref, atol=5e-2, rtol=5e-2)

    print("KERNEL_OK")
</pallas_src>

<mosaic_0001>
module attributes {stable_mosaic.version = 11 : i64} {
  func.func @_wavenet_kernel(%arg0: i32, %arg1: i32, %arg2: memref<1x16x4xf32, #tpu.memory_space<vmem>>, %arg3: memref<3x4x8xf32, #tpu.memory_space<vmem>>, %arg4: memref<1x8xf32, #tpu.memory_space<vmem>>, %arg5: memref<8x8xf32, #tpu.memory_space<vmem>>, %arg6: memref<1x8xf32, #tpu.memory_space<vmem>>, %arg7: memref<1x16x4xf32, #tpu.memory_space<vmem>>, %arg8: memref<1x16x4xf32, #tpu.memory_space<vmem>>, %arg9: memref<1x8x4xf32, #tpu.memory_space<vmem>>) attributes {dimension_semantics = [#tpu.dimension_semantics<parallel>, #tpu.dimension_semantics<arbitrary>], iteration_bounds = array<i64: 2, 1>, scalar_prefetch = 0 : i64, scratch_operands = 1 : i64, tpu.core_type = #tpu.core_type<tc>, window_params = [{transform_indices = @transform_0, window_bounds = array<i64: 1, 16, 4>}, {pipeline_mode = #tpu.pipeline_mode<synchronous>, transform_indices = @transform_1, window_bounds = array<i64: 3, 4, 8>}, {pipeline_mode = #tpu.pipeline_mode<synchronous>, transform_indices = @transform_2, window_bounds = array<i64: 1, 8>}, {pipeline_mode = #tpu.pipeline_mode<synchronous>, transform_indices = @transform_3, window_bounds = array<i64: 8, 8>}, {pipeline_mode = #tpu.pipeline_mode<synchronous>, transform_indices = @transform_4, window_bounds = array<i64: 1, 8>}, {transform_indices = @transform_5, window_bounds = array<i64: 1, 16, 4>}, {transform_indices = @transform_6, window_bounds = array<i64: 1, 16, 4>}]} {
    %c0 = arith.constant 0 : index
    %c0_0 = arith.constant 0 : index
    %c0_1 = arith.constant 0 : index
    %0 = vector.load %arg2[%c0, %c0_0, %c0_1] : memref<1x16x4xf32, #tpu.memory_space<vmem>>, vector<1x16x4xf32>
    %c0_i32 = arith.constant 0 : i32
    %1 = arith.cmpi eq, %arg1, %c0_i32 : i32
    %2 = arith.extui %1 : i1 to i32
    %c0_i32_2 = arith.constant 0 : i32
    %3 = arith.cmpi ne, %2, %c0_i32_2 : i32
    scf.if %3 {
      %cst_32 = arith.constant 0.000000e+00 : f32
      %44 = vector.broadcast %cst_32 : f32 to vector<1x8x4xf32>
      %c0_33 = arith.constant 0 : index
      %c0_34 = arith.constant 0 : index
      %c0_35 = arith.constant 0 : index
      %45 = vector.load %arg9[%c0_33, %c0_34, %c0_35] : memref<1x8x4xf32, #tpu.memory_space<vmem>>, vector<1x8x4xf32>
      tpu.vector_store %arg9[%c0_33, %c0_34, %c0_35], %44 {strides = array<i32>} : memref<1x8x4xf32, #tpu.memory_space<vmem>>, vector<1x8x4xf32>,
    } else {
    }
    %c0_3 = arith.constant 0 : index
    %c0_4 = arith.constant 0 : index
    %c0_5 = arith.constant 0 : index
    %4 = vector.load %arg9[%c0_3, %c0_4, %c0_5] : memref<1x8x4xf32, #tpu.memory_space<vmem>>, vector<1x8x4xf32>
    %5 = tpu.concatenate %4, %0 in 1 : vector<1x8x4xf32>, vector<1x16x4xf32> -> vector<1x24x4xf32>
    %6 = vector.extract_strided_slice %0 {offsets = [0, 8, 0], sizes = [1, 8, 4], strides = [1, 1, 1]} : vector<1x16x4xf32> to vector<1x8x4xf32>
    %c0_6 = arith.constant 0 : index
    %c0_7 = arith.constant 0 : index
    %c0_8 = arith.constant 0 : index
    %7 = vector.load %arg9[%c0_6, %c0_7, %c0_8] : memref<1x8x4xf32, #tpu.memory_space<vmem>>, vector<1x8x4xf32>
    tpu.vector_store %arg9[%c0_6, %c0_7, %c0_8], %6 {strides = array<i32>} : memref<1x8x4xf32, #tpu.memory_space<vmem>>, vector<1x8x4xf32>,
    %cst = arith.constant 0.000000e+00 : f32
    %8 = vector.broadcast %cst : f32 to vector<16x8xf32>
    %9 = vector.extract_strided_slice %5 {offsets = [0, 4, 0], sizes = [1, 16, 4], strides = [1, 1, 1]} : vector<1x24x4xf32> to vector<1x16x4xf32>
    %10 = vector.shape_cast %9 : vector<1x16x4xf32> to vector<16x4xf32>
    %c0_9 = arith.constant 0 : index
    %c0_10 = arith.constant 0 : index
    %c0_11 = arith.constant 0 : index
    %11 = vector.load %arg3[%c0_9, %c0_10, %c0_11] : memref<3x4x8xf32, #tpu.memory_space<vmem>>, vector<1x4x8xf32>
    %12 = vector.shape_cast %11 : vector<1x4x8xf32> to vector<4x8xf32>
    %cst_12 = arith.constant dense<0.000000e+00> : vector<16x8xf32>
    %13 = tpu.matmul %10, %12, %cst_12 {dimension_numbers = #tpu.dot_dimension_numbers<[1], [0], [0], [1], [0, 0, 1, 1], [], []>} : vector<16x4xf32>, vector<4x8xf32>, vector<16x8xf32> -> vector<16x8xf32>
    %14 = arith.addf %8, %13 : vector<16x8xf32>
    %15 = vector.extract_strided_slice %5 {offsets = [0, 6, 0], sizes = [1, 16, 4], strides = [1, 1, 1]} : vector<1x24x4xf32> to vector<1x16x4xf32>
    %16 = vector.shape_cast %15 : vector<1x16x4xf32> to vector<16x4xf32>
    %c1 = arith.constant 1 : index
    %c0_13 = arith.constant 0 : index
    %c0_14 = arith.constant 0 : index
    %17 = vector.load %arg3[%c1, %c0_13, %c0_14] : memref<3x4x8xf32, #tpu.memory_space<vmem>>, vector<1x4x8xf32>
    %18 = vector.shape_cast %17 : vector<1x4x8xf32> to vector<4x8xf32>
    %cst_15 = arith.constant dense<0.000000e+00> : vector<16x8xf32>
    %19 = tpu.matmul %16, %18, %cst_15 {dimension_numbers = #tpu.dot_dimension_numbers<[1], [0], [0], [1], [0, 0, 1, 1], [], []>} : vector<16x4xf32>, vector<4x8xf32>, vector<16x8xf32> -> vector<16x8xf32>
    %20 = arith.addf %14, %19 : vector<16x8xf32>
    %21 = vector.extract_strided_slice %5 {offsets = [0, 8, 0], sizes = [1, 16, 4], strides = [1, 1, 1]} : vector<1x24x4xf32> to vector<1x16x4xf32>
    %22 = vector.shape_cast %21 : vector<1x16x4xf32> to vector<16x4xf32>
    %c2 = arith.constant 2 : index
    %c0_16 = arith.constant 0 : index
    %c0_17 = arith.constant 0 : index
    %23 = vector.load %arg3[%c2, %c0_16, %c0_17] : memref<3x4x8xf32, #tpu.memory_space<vmem>>, vector<1x4x8xf32>
    %24 = vector.shape_cast %23 : vector<1x4x8xf32> to vector<4x8xf32>
    %cst_18 = arith.constant dense<0.000000e+00> : vector<16x8xf32>
    %25 = tpu.matmul %22, %24, %cst_18 {dimension_numbers = #tpu.dot_dimension_numbers<[1], [0], [0], [1], [0, 0, 1, 1], [], []>} : vector<16x4xf32>, vector<4x8xf32>, vector<16x8xf32> -> vector<16x8xf32>
    %26 = arith.addf %20, %25 : vector<16x8xf32>
    %c0_19 = arith.constant 0 : index
    %c0_20 = arith.constant 0 : index
    %27 = vector.load %arg4[%c0_19, %c0_20] : memref<1x8xf32, #tpu.memory_space<vmem>>, vector<1x8xf32>
    %28 = vector.broadcast %27 : vector<1x8xf32> to vector<16x8xf32>
    %29 = arith.addf %26, %28 : vector<16x8xf32>
    %30 = math.tanh %29 : vector<16x8xf32>
    %c0_21 = arith.constant 0 : index
    %c0_22 = arith.constant 0 : index
    %31 = vector.load %arg5[%c0_21, %c0_22] : memref<8x8xf32, #tpu.memory_space<vmem>>, vector<8x8xf32>
    %cst_23 = arith.constant dense<0.000000e+00> : vector<16x8xf32>
    %32 = tpu.matmul %30, %31, %cst_23 {dimension_numbers = #tpu.dot_dimension_numbers<[1], [0], [0], [1], [0, 0, 1, 1], [], []>} : vector<16x8xf32>, vector<8x8xf32>, vector<16x8xf32> -> vector<16x8xf32>
    %c0_24 = arith.constant 0 : index
    %c0_25 = arith.constant 0 : index
    %33 = vector.load %arg6[%c0_24, %c0_25] : memref<1x8xf32, #tpu.memory_space<vmem>>, vector<1x8xf32>
    %34 = vector.broadcast %33 : vector<1x8xf32> to vector<16x8xf32>
    %35 = arith.addf %32, %34 : vector<16x8xf32>
    %36 = vector.extract_strided_slice %35 {offsets = [0, 0], sizes = [16, 4], strides = [1, 1]} : vector<16x8xf32> to vector<16x4xf32>
    %37 = vector.shape_cast %0 : vector<1x16x4xf32> to vector<16x4xf32>
    %38 = arith.addf %36, %37 : vector<16x4xf32>
    %39 = vector.extract_strided_slice %35 {offsets = [0, 4], sizes = [16, 4], strides = [1, 1]} : vector<16x8xf32> to vector<16x4xf32>
    %40 = vector.shape_cast %38 : vector<16x4xf32> to vector<1x16x4xf32>
    %c0_26 = arith.constant 0 : index
    %c0_27 = arith.constant 0 : index
    %c0_28 = arith.constant 0 : index
    %41 = vector.load %arg7[%c0_26, %c0_27, %c0_28] : memref<1x16x4xf32, #tpu.memory_space<vmem>>, vector<1x16x4xf32>
    tpu.vector_store %arg7[%c0_26, %c0_27, %c0_28], %40 {strides = array<i32>} : memref<1x16x4xf32, #tpu.memory_space<vmem>>, vector<1x16x4xf32>,
    %42 = vector.shape_cast %39 : vector<16x4xf32> to vector<1x16x4xf32>
    %c0_29 = arith.constant 0 : index
    %c0_30 = arith.constant 0 : index
    %c0_31 = arith.constant 0 : index
    %43 = vector.load %arg8[%c0_29, %c0_30, %c0_31] : memref<1x16x4xf32, #tpu.memory_space<vmem>>, vector<1x16x4xf32>
    tpu.vector_store %arg8[%c0_29, %c0_30, %c0_31], %42 {strides = array<i32>} : memref<1x16x4xf32, #tpu.memory_space<vmem>>, vector<1x16x4xf32>,
    return
  }
  func.func @transform_0(%arg0: i32, %arg1: i32) -> (i32, i32, i32) {
    %c0_i32 = arith.constant 0 : i32
    %c0_i32_0 = arith.constant 0 : i32
    return %arg0, %arg1, %c0_i32 : i32, i32, i32
  }
  func.func @transform_1(%arg0: i32, %arg1: i32) -> (i32, i32, i32) {
    %c0_i32 = arith.constant 0 : i32
    %c0_i32_0 = arith.constant 0 : i32
    %c0_i32_1 = arith.constant 0 : i32
    %c0_i32_2 = arith.constant 0 : i32
    return %c0_i32, %c0_i32_0, %c0_i32_1 : i32, i32, i32
  }
  func.func @transform_2(%arg0: i32, %arg1: i32) -> (i32, i32) {
    %c0_i32 = arith.constant 0 : i32
    %c0_i32_0 = arith.constant 0 : i32
    %c0_i32_1 = arith.constant 0 : i32
    return %c0_i32, %c0_i32_0 : i32, i32
  }
  func.func @transform_3(%arg0: i32, %arg1: i32) -> (i32, i32) {
    %c0_i32 = arith.constant 0 : i32
    %c0_i32_0 = arith.constant 0 : i32
    %c0_i32_1 = arith.constant 0 : i32
    return %c0_i32, %c0_i32_0 : i32, i32
  }
  func.func @transform_4(%arg0: i32, %arg1: i32) -> (i32, i32) {
    %c0_i32 = arith.constant 0 : i32
    %c0_i32_0 = arith.constant 0 : i32
    %c0_i32_1 = arith.constant 0 : i32
    return %c0_i32, %c0_i32_0 : i32, i32
  }
  func.func @transform_5(%arg0: i32, %arg1: i32) -> (i32, i32, i32) {
    %c0_i32 = arith.constant 0 : i32
    %c0_i32_0 = arith.constant 0 : i32
    return %arg0, %arg1, %c0_i32 : i32, i32, i32
  }
  func.func @transform_6(%arg0: i32, %arg1: i32) -> (i32, i32, i32) {
    %c0_i32 = arith.constant 0 : i32
    %c0_i32_0 = arith.constant 0 : i32
    return %arg0, %arg1, %c0_i32 : i32, i32, i32
  }
}

</mosaic_0001>

<llo_original>
// kernel: tpu_custom_call.1
$region0: #{tpu_custom_call.1}
  #allocation0 [shape = 'u32[]', space=smem, size = 0x4, offset = 0x4, fixed_abs, tag = 'smem constant byte address 0x4 - core index']
  #allocation1 [shape = 'u32[144,128]{1,0:T(1,128)}', space=vmem, size = 0x12000, scoped, tag = 'internal scratch']
  #allocation2 [shape = 'f32[1,8,4]{2,1,0:T(8,128)}', space=vmem, size = 0x1000, scoped, tag = 'scratch operand']
  %s0 = inlined_call_operand.vmem [shape: f32[2,16,4], index: 0, kind: input, shape index: {}]
  %s1 = inlined_call_operand.vmem [shape: f32[3,4,8], index: 1, kind: input, shape index: {}]
  %s2 = inlined_call_operand.vmem [shape: f32[1,8], index: 2, kind: input, shape index: {}]
  %s3 = inlined_call_operand.vmem [shape: f32[8,8], index: 3, kind: input, shape index: {}]
  %s4 = inlined_call_operand.vmem [shape: f32[1,8], index: 4, kind: input, shape index: {}]
  %s5 = inlined_call_operand.vmem [shape: f32[2,16,4], index: 5, kind: output, shape index: {0}]
  %s6 = inlined_call_operand.vmem [shape: f32[2,16,4], index: 6, kind: output, shape index: {1}]
  %7 = xla_tuple %s5, %s6
  %s8 = sld [smem:[#allocation0]]
  $region65: #{tpu_custom_call.1} parent=0
    _
  %s10 = ssub.s32 1, %s8
  %s11 = scalar_select 0, %s10, %s8
  loop: start=0, step=1, limit=4
  $region2: #{tpu_custom_call.1} parent=0 // loop_pre_header
    _
  $region3: #{tpu_custom_call.1} parent=0 // loop_header
    %s13 = sphi 0, %s17
    %p14 = scmp.ge.s32.totalorder %s13, 4
    %s20 = sphi 0, %s32
    %s21 = sphi 0, %s28
    %s22 = sphi 0, %s20
    %s23 = sphi 0, %s21
    %s24 = sphi 0, %s22
    %s25 = sphi 0, %s23
    %s37 = sphi 0, %s39
    %s40 = sphi 0, %s37
    %s41 = sphi 0, %s40
    %s57 = sphi 0, %s41
    %s61 = sphi 0, %s61
    %s63 = sphi 0, %s61
    %s64 = sphi 0, %s63
    %s78 = sphi 0, %s64
    %s82 = sphi 0, %s82
    %s84 = sphi 0, %s82
    %s85 = sphi 0, %s84
    %s99 = sphi 0, %s85
    %s103 = sphi 0, %s103
    %s105 = sphi 0, %s103
    %s106 = sphi 0, %s105
    %s120 = sphi 0, %s106
    %s124 = sphi 0, %s124
    %s126 = sphi 0, %s124
    %s127 = sphi 0, %s126
    %s141 = sphi 0, %s127
    %s149 = sphi 0, %s151
    %s152 = sphi 0, %s149
    %s153 = sphi 0, %s152
    %s169 = sphi 0, %s153
    %s177 = sphi 0, %s179
    %s180 = sphi 0, %s177
    %s181 = sphi 0, %s180
    %s197 = sphi 0, %s181
  $region4: #{tpu_custom_call.1} parent=0 // loop_header_branch
    %16 = sbr.rel (%p14) target = $region8
  $region5: #{tpu_custom_call.1} parent=0 // loop_body
    %s18 = ssub.s32 %s13, 1
    %s19 = ssub.s32 %s13, 2
    %s26 = sadd.s32 1, %s21
    %p27 = scmp.ge.s32.totalorder %s26, 1
    %s28 = scalar_select %p27, 0, %s26
    %s29 = sadd.s32 1, %s20
    %s30 = scalar_select %p27, %s29, %s20
    %p31 = scmp.ge.s32.totalorder %s30, 2
    %s32 = scalar_select %p31, 0, %s30
    %s33 = ssub.s32 %s20, %s32
    %s34 = ssub.s32 %s21, %s28
    %s35 = sor.u32 %s33, %s34
    %p36 = scmp.eq.s32.totalorder %s35, 0
    %s38 = sadd.s32 %s37, 1
    %s39 = scalar_select %p36, %s37, %s38
    %p42 = pneg %p36
    %p43 = scmp.eq.s32.totalorder %s13, 1
    %p44 = por %p42, %p43
    %p45 = scmp.ne.s32.totalorder %s37, %s40
    %p46 = scmp.eq.s32.totalorder %s13, 0
    %p47 = por %p45, %p46
    %p48 = scmp.ne.s32.totalorder %s37, %s40
    %p49 = scmp.eq.s32.totalorder %s18, 1
    %p50 = por %p48, %p49
    %p51 = scmp.ne.s32.totalorder %s40, %s41
    %p52 = scmp.eq.s32.totalorder %s18, 0
    %p53 = por %p51, %p52
    %p54 = scmp.ne.s32.totalorder %s40, %s41
    %p55 = scmp.eq.s32.totalorder %s19, 1
    %p56 = por %p54, %p55
    %p58 = scmp.ne.s32.totalorder %s41, %s57
    %p59 = scmp.eq.s32.totalorder %s19, 0
    %p60 = por %p58, %p59
    %s62 = sadd.s32 %s61, 1
    %p65 = scmp.eq.s32.totalorder %s13, 1
    %p66 = scmp.ne.s32.totalorder %s61, %s63
    %p67 = scmp.eq.s32.totalorder %s13, 0
    %p68 = por %p66, %p67
    %p69 = scmp.ne.s32.totalorder %s61, %s63
    %p70 = scmp.eq.s32.totalorder %s18, 1
    %p71 = por %p69, %p70
    %p72 = scmp.ne.s32.totalorder %s63, %s64
    %p73 = scmp.eq.s32.totalorder %s18, 0
    %p74 = por %p72, %p73
    %p75 = scmp.ne.s32.totalorder %s63, %s64
    %p76 = scmp.eq.s32.totalorder %s19, 1
    %p77 = por %p75, %p76
    %p79 = scmp.ne.s32.totalorder %s64, %s78
    %p80 = scmp.eq.s32.totalorder %s19, 0
    %p81 = por %p79, %p80
    %s83 = sadd.s32 %s82, 1
    %p86 = scmp.eq.s32.totalorder %s13, 1
    %p87 = scmp.ne.s32.totalorder %s82, %s84
    %p88 = scmp.eq.s32.totalorder %s13, 0
    %p89 = por %p87, %p88
    %p90 = scmp.ne.s32.totalorder %s82, %s84
    %p91 = scmp.eq.s32.totalorder %s18, 1
    %p92 = por %p90, %p91
    %p93 = scmp.ne.s32.totalorder %s84, %s85
    %p94 = scmp.eq.s32.totalorder %s18, 0
    %p95 = por %p93, %p94
    %p96 = scmp.ne.s32.totalorder %s84, %s85
    %p97 = scmp.eq.s32.totalorder %s19, 1
    %p98 = por %p96, %p97
    %p100 = scmp.ne.s32.totalorder %s85, %s99
    %p101 = scmp.eq.s32.totalorder %s19, 0
    %p102 = por %p100, %p101
    %s104 = sadd.s32 %s103, 1
    %p107 = scmp.eq.s32.totalorder %s13, 1
    %p108 = scmp.ne.s32.totalorder %s103, %s105
    %p109 = scmp.eq.s32.totalorder %s13, 0
    %p110 = por %p108, %p109
    %p111 = scmp.ne.s32.totalorder %s103, %s105
    %p112 = scmp.eq.s32.totalorder %s18, 1
    %p113 = por %p111, %p112
    %p114 = scmp.ne.s32.totalorder %s105, %s106
    %p115 = scmp.eq.s32.totalorder %s18, 0
    %p116 = por %p114, %p115
    %p117 = scmp.ne.s32.totalorder %s105, %s106
    %p118 = scmp.eq.s32.totalorder %s19, 1
    %p119 = por %p117, %p118
    %p121 = scmp.ne.s32.totalorder %s106, %s120
    %p122 = scmp.eq.s32.totalorder %s19, 0
    %p123 = por %p121, %p122
    %s125 = sadd.s32 %s124, 1
    %p128 = scmp.eq.s32.totalorder %s13, 1
    %p129 = scmp.ne.s32.totalorder %s124, %s126
    %p130 = scmp.eq.s32.totalorder %s13, 0
    %p131 = por %p129, %p130
    %p132 = scmp.ne.s32.totalorder %s124, %s126
    %p133 = scmp.eq.s32.totalorder %s18, 1
    %p134 = por %p132, %p133
    %p135 = scmp.ne.s32.totalorder %s126, %s127
    %p136 = scmp.eq.s32.totalorder %s18, 0
    %p137 = por %p135, %p136
    %p138 = scmp.ne.s32.totalorder %s126, %s127
    %p139 = scmp.eq.s32.totalorder %s19, 1
    %p140 = por %p138, %p139
    %p142 = scmp.ne.s32.totalorder %s127, %s141
    %p143 = scmp.eq.s32.totalorder %s19, 0
    %p144 = por %p142, %p143
    %s145 = ssub.s32 %s20, %s32
    %s146 = ssub.s32 %s21, %s28
    %s147 = sor.u32 %s145, %s146
    %p148 = scmp.eq.s32.totalorder %s147, 0
    %s150 = sadd.s32 %s149, 1
    %s151 = scalar_select %p148, %s149, %s150
    %p154 = pneg %p148
    %p155 = scmp.eq.s32.totalorder %s13, 1
    %p156 = por %p154, %p155
    %p157 = scmp.ne.s32.totalorder %s149, %s152
    %p158 = scmp.eq.s32.totalorder %s13, 0
    %p159 = por %p157, %p158
    %p160 = scmp.ne.s32.totalorder %s149, %s152
    %p161 = scmp.eq.s32.totalorder %s18, 1
    %p162 = por %p160, %p161
    %p163 = scmp.ne.s32.totalorder %s152, %s153
    %p164 = scmp.eq.s32.totalorder %s18, 0
    %p165 = por %p163, %p164
    %p166 = scmp.ne.s32.totalorder %s152, %s153
    %p167 = scmp.eq.s32.totalorder %s19, 1
    %p168 = por %p166, %p167
    %p170 = scmp.ne.s32.totalorder %s153, %s169
    %p171 = scmp.eq.s32.totalorder %s19, 0
    %p172 = por %p170, %p171
    %s173 = ssub.s32 %s20, %s32
    %s174 = ssub.s32 %s21, %s28
    %s175 = sor.u32 %s173, %s174
    %p176 = scmp.eq.s32.totalorder %s175, 0
    %s178 = sadd.s32 %s177, 1
    %s179 = scalar_select %p176, %s177, %s178
    %p182 = pneg %p176
    %p183 = scmp.eq.s32.totalorder %s13, 1
    %p184 = por %p182, %p183
    %p185 = scmp.ne.s32.totalorder %s177, %s180
    %p186 = scmp.eq.s32.totalorder %s13, 0
    %p187 = por %p185, %p186
    %p188 = scmp.ne.s32.totalorder %s177, %s180
    %p189 = scmp.eq.s32.totalorder %s18, 1
    %p190 = por %p188, %p189
    %p191 = scmp.ne.s32.totalorder %s180, %s181
    %p192 = scmp.eq.s32.totalorder %s18, 0
    %p193 = por %p191, %p192
    %p194 = scmp.ne.s32.totalorder %s180, %s181
    %p195 = scmp.eq.s32.totalorder %s19, 1
    %p196 = por %p194, %p195
    %p198 = scmp.ne.s32.totalorder %s181, %s197
    %p199 = scmp.eq.s32.totalorder %s19, 0
    %p200 = por %p198, %p199
    %p201 = scmp.le.s32.totalorder 1, %s13
    %p202 = scmp.lt.s32.totalorder %s13, 3
    %p203 = pnand %p201, %p202
    %p204 = pneg %p203
    // Predicated region
    $region9: #{tpu_custom_call.1} parent=5 // pred_check
      _
    $region10: #{tpu_custom_call.1} parent=5 // pred_check_branch
      %206 = sbr.rel (%p203) target = $region12
    $region11: #{tpu_custom_call.1} parent=5 // pred_region
      %s207 = ssub.s32 %s13, 1
      // Predicated region
      $region13: #{tpu_custom_call.1} parent=11 // pred_check
        %p208 = pneg %p74
      $region14: #{tpu_custom_call.1} parent=11 // pred_check_branch
        %210 = sbr.rel (%p208) target = $region16
      $region15: #{tpu_custom_call.1} parent=11 // pred_region
        _
      $region16: #{tpu_custom_call.1} parent=11 // pred_fallthru
        _
      // Predicated region
      $region17: #{tpu_custom_call.1} parent=11 // pred_check
        %p211 = pneg %p95
      $region18: #{tpu_custom_call.1} parent=11 // pred_check_branch
        %213 = sbr.rel (%p211) target = $region20
      $region19: #{tpu_custom_call.1} parent=11 // pred_region
        _
      $region20: #{tpu_custom_call.1} parent=11 // pred_fallthru
        _
      // Predicated region
      $region21: #{tpu_custom_call.1} parent=11 // pred_check
        %p214 = pneg %p116
      $region22: #{tpu_custom_call.1} parent=11 // pred_check_branch
        %216 = sbr.rel (%p214) target = $region24
      $region23: #{tpu_custom_call.1} parent=11 // pred_region
        _
      $region24: #{tpu_custom_call.1} parent=11 // pred_fallthru
        _
      // Predicated region
      $region25: #{tpu_custom_call.1} parent=11 // pred_check
        %p217 = pneg %p137
      $region26: #{tpu_custom_call.1} parent=11 // pred_check_branch
        %219 = sbr.rel (%p217) target = $region28
      $region27: #{tpu_custom_call.1} parent=11 // pred_region
        _
      $region28: #{tpu_custom_call.1} parent=11 // pred_fallthru
        _
    $region12: #{tpu_custom_call.1} parent=5 // pred_fallthru
      _
    %p220 = scmp.lt.s32.totalorder %s13, 2
    // Predicated region
    $region29: #{tpu_custom_call.1} parent=5 // pred_check
      %p221 = pneg %p220
    $region30: #{tpu_custom_call.1} parent=5 // pred_check_branch
      %223 = sbr.rel (%p221) target = $region32
    $region31: #{tpu_custom_call.1} parent=5 // pred_region
      // Predicated region
      $region33: #{tpu_custom_call.1} parent=31 // pred_check
        %p224 = pneg %p47
      $region34: #{tpu_custom_call.1} parent=31 // pred_check_branch
        %226 = sbr.rel (%p224) target = $region36
      $region35: #{tpu_custom_call.1} parent=31 // pred_region
        %s227 = smul.u32 2, %s21
        %p228 = scmp.lt.s32.totalorder %s20, 1
        %s229 = scalar_select %p228, %s20, 1
        %p230 = scmp.lt.s32.totalorder %s227, 1
        %s231 = scalar_select %p230, %s227, 1
        %s232 = smul.addr %s229, 2
        %s233 = sadd.s32 %s231, %s232
        %s234 = smul.addr %s233, 8
        %s235 = scalar_lea.vmem %s0, %s234
        %s236 = smul.u32 2, %s21
      $region36: #{tpu_custom_call.1} parent=31 // pred_fallthru
        _
    $region32: #{tpu_custom_call.1} parent=5 // pred_fallthru
      _
    %p237 = scmp.le.s32.totalorder 1, %s13
    %p238 = scmp.lt.s32.totalorder %s13, 3
    %p239 = pnand %p237, %p238
    %p240 = pneg %p239
    // Predicated region
    $region37: #{tpu_custom_call.1} parent=5 // pred_check
      _
    $region38: #{tpu_custom_call.1} parent=5 // pred_check_branch
      %242 = sbr.rel (%p239) target = $region40
    $region39: #{tpu_custom_call.1} parent=5 // pred_region
      %s243 = ssub.s32 %s13, 1
      %s244 = smul.u32 2, %s23
      %p245 = scmp.lt.s32.totalorder %s22, 1
      %s246 = scalar_select %p245, %s22, 1
      %p247 = scmp.lt.s32.totalorder %s244, 1
      %s248 = scalar_select %p247, %s244, 1
      %s249 = smul.addr %s246, 2
      %s250 = sadd.s32 %s248, %s249
      %s251 = smul.addr %s250, 8
      %s252 = scalar_lea.vmem %s0, %s251
      %p253 = pneg %p53
      %p254 = pneg %p50
      %p255 = pneg %p74
      %p256 = pneg %p71
      %p257 = pneg %p95
      %p258 = pneg %p92
      %p259 = pneg %p116
      %p260 = pneg %p113
      %p261 = pneg %p137
      %p262 = pneg %p134
      %p263 = pneg %p165
      %p264 = pneg %p162
      %s265 = smul.u32 2, %s23
      %p266 = scmp.lt.s32.totalorder %s22, 1
      %s267 = scalar_select %p266, %s22, 1
      %p268 = scmp.lt.s32.totalorder %s265, 1
      %s269 = scalar_select %p268, %s265, 1
      %s270 = smul.addr %s267, 2
      %s271 = sadd.s32 %s269, %s270
      %s272 = smul.addr %s271, 8
      %s273 = scalar_lea.vmem %s5, %s272
      %p274 = pneg %p193
      %p275 = pneg %p190
      %s276 = smul.u32 2, %s23
      %p277 = scmp.lt.s32.totalorder %s22, 1
      %s278 = scalar_select %p277, %s22, 1
      %p279 = scmp.lt.s32.totalorder %s276, 1
      %s280 = scalar_select %p279, %s276, 1
      %s281 = smul.addr %s278, 2
      %s282 = sadd.s32 %s280, %s281
      %s283 = smul.addr %s282, 8
      %s284 = scalar_lea.vmem %s6, %s283
      %s285 = smul.u32 2, %s23
      %p286 = scmp.lt.s32.totalorder %s22, 1
      %s287 = scalar_select %p286, %s22, 1
      %p288 = scmp.lt.s32.totalorder %s285, 1
      %s289 = scalar_select %p288, %s285, 1
      %s290 = smul.addr %s287, 2
      %s291 = sadd.s32 %s289, %s290
      %s292 = smul.addr %s291, 8
      %s293 = scalar_lea.vmem %s0, %s292
      %s294 = smul.u32 2, %s23
      %s295 = smul.u32 2, %s23
      %p296 = scmp.lt.s32.totalorder %s22, 1
      %s297 = scalar_select %p296, %s22, 1
      %p298 = scmp.lt.s32.totalorder %s295, 1
      %s299 = scalar_select %p298, %s295, 1
      %s300 = smul.addr %s297, 2
      %s301 = sadd.s32 %s299, %s300
      %s302 = smul.addr %s301, 8
      %s303 = scalar_lea.vmem %s5, %s302
      %s304 = smul.u32 2, %s23
      %s305 = smul.u32 2, %s23
      %p306 = scmp.lt.s32.totalorder %s22, 1
      %s307 = scalar_select %p306, %s22, 1
      %p308 = scmp.lt.s32.totalorder %s305, 1
      %s309 = scalar_select %p308, %s305, 1
      %s310 = smul.addr %s307, 2
      %s311 = sadd.s32 %s309, %s310
      %s312 = smul.addr %s311, 8
      %s313 = scalar_lea.vmem %s6, %s312
      %s314 = smul.u32 2, %s23
      %v315 = vld [vmem:[%s293] sm:$0xff]
      %v316 = vld [vmem:[%s293 + $0x8] sm:$0xff]
      %p317 = scmp.eq.s32.totalorder %s23, 0
      // Predicated region
      $region41: #{tpu_custom_call.1} parent=39 // pred_check
        %p318 = pneg %p317
      $region42: #{tpu_custom_call.1} parent=39 // pred_check_branch
        %320 = sbr.rel (%p318) target = $region44
      $region43: #{tpu_custom_call.1} parent=39 // pred_region
        %vm321 = vcmask 31744
        %322 = vst.msk [vmem:[#allocation2] sm:$0xff] %vm321, 0.0
      $region44: #{tpu_custom_call.1} parent=39 // pred_fallthru
        _
      %v323 = vld [vmem:[#allocation2] sm:$0xff]
      %vm324 = vcmask 31744
      %325 = vst.msk [vmem:[#allocation2] sm:$0xff] %vm324, %v316
      %v326 = vld [vmem:[%s1] sm:$0xf]
      %s327 = scalar_lea.vmem %s1, 4
      %v328 = vld [vmem:[%s327] sm:$0xf]
      %vm332 = vcmask 1041408
      %v333 = vrot.slane %v323, 6
      %v334 = vrot.slane %v315, 6
      %v335 = vsel %vm332, %v333, %v334
      %v336 = vrot.slane %v316, 6
      %v337 = vsel %vm332, %v334, %v336
      %v338 = vsel %vm324, %v335, 0
      %v340 = vsel %vm324, %v337, 0
      %vm342 = vcmask 1043456
      %v344 = vsel %vm342, %v328, 0
      %346 = vmatprep.subr.mxu0 0.0
      %347 = vmatpush1.msra.mxu0 0.0
      %348 = vmatprep.subr.mxu0 0.0
      %349 = vmatpush1.msra.mxu0 0.0
      %350 = vmatprep.subr.mxu0 0.0
      %351 = vmatpush1.msra.mxu0 0.0
      %352 = vmatprep.subr.mxu0 0.0
      %353 = vmatpush1.msra.mxu0 0.0
      %354 = vmatprep.subr.mxu0 0.0
      %355 = vmatpush1.msra.mxu0 0.0
      %356 = vmatprep.subr.mxu0 0.0
      %357 = vmatpush1.msra.mxu0 0.0
      %358 = vmatprep.subr.mxu0 0.0
      %359 = vmatpush1.msra.mxu0 0.0
      %360 = vmatprep.subr.mxu0 0.0
      %361 = vmatpush1.msra.mxu0 0.0
      %362 = vmatprep.subr.mxu0 0.0
      %363 = vmatpush1.msra.mxu0 0.0
      %364 = vmatprep.subr.mxu0 0.0
      %365 = vmatpush1.msra.mxu0 0.0
      %366 = vmatprep.subr.mxu0 0.0
      %367 = vmatpush1.msra.mxu0 0.0
      %368 = vmatprep.subr.mxu0 0.0
      %369 = vmatpush1.msra.mxu0 0.0
      %370 = vmatprep.subr.mxu0 0.0
      %371 = vmatpush1.msra.mxu0 0.0
      %372 = vmatprep.subr.mxu0 0.0
      %373 = vmatpush1.msra.mxu0 0.0
      %374 = vmatprep.subr.mxu0 0.0
      %375 = vmatpush1.msra.mxu0 0.0
      %376 = vmatprep.subr.mxu0 0.0
      %377 = vmatpush1.msra.mxu0 %v344
      %378 = vmatprep.subr.mxu0 0.0
      %379 = vmatpush2.msra.mxu0 0.0
      %380 = vmatprep.subr.mxu0 0.0
      %381 = vmatpush2.msra.mxu0 0.0
      %382 = vmatprep.subr.mxu0 0.0
      %383 = vmatpush2.msra.mxu0 0.0
      %384 = vmatprep.subr.mxu0 0.0
      %385 = vmatpush2.msra.mxu0 0.0
      %386 = vmatprep.subr.mxu0 0.0
      %387 = vmatpush2.msra.mxu0 0.0
      %388 = vmatprep.subr.mxu0 0.0
      %389 = vmatpush2.msra.mxu0 0.0
      %390 = vmatprep.subr.mxu0 0.0
      %391 = vmatpush2.msra.mxu0 0.0
      %392 = vmatprep.subr.mxu0 0.0
      %393 = vmatpush2.msra.mxu0 0.0
      %394 = vmatprep.subr.mxu0 0.0
      %395 = vmatpush2.msra.mxu0 0.0
      %396 = vmatprep.subr.mxu0 0.0
      %397 = vmatpush2.msra.mxu0 0.0
      %398 = vmatprep.subr.mxu0 0.0
      %399 = vmatpush2.msra.mxu0 0.0
      %400 = vmatprep.subr.mxu0 0.0
      %401 = vmatpush2.msra.mxu0 0.0
      %402 = vmatprep.subr.mxu0 0.0
      %403 = vmatpush2.msra.mxu0 0.0
      %404 = vmatprep.subr.mxu0 0.0
      %405 = vmatpush2.msra.mxu0 0.0
      %406 = vmatprep.subr.mxu0 0.0
      %407 = vmatpush2.msra.mxu0 0.0
      %408 = vmatprep.subr.mxu0 0.0
      %409 = vmatpush2.msra.mxu0 0.0
      %410 = vmatprep.mubr.f32.mxu0 0.0
      %411 = vmatmul.mubr.f32.gmra.mxu0 %v338
      %v412 = vpop.f32.mrf.mxu0
      %v413 = vadd.f32 0.0, %v412
      %v414 = vpop.f32.mrf.mxu0
      %415 = vmatprep.mubr.f32.mxu0 0.0
      %416 = vmatmul.mubr.f32.gmra.mxu0 %v340
      %v417 = vpop.f32.mrf.mxu0
      %v418 = vadd.f32 0.0, %v417
      %v419 = vpop.f32.mrf.mxu0
      %420 = vdwg.mxu0
      %v421 = vrot.slane %v323, 4
      %v422 = vrot.slane %v315, 4
      %v423 = vsel %vm342, %v421, %v422
      %v424 = vrot.slane %v316, 4
      %v425 = vsel %vm342, %v422, %v424
      %v426 = vsel %vm324, %v423, 0
      %v428 = vsel %vm324, %v425, 0
      %v431 = vsel %vm342, %v326, 0
      %433 = vmatprep.subr.mxu0 0.0
      %434 = vmatpush1.msra.mxu0 0.0
      %435 = vmatprep.subr.mxu0 0.0
      %436 = vmatpush1.msra.mxu0 0.0
      %437 = vmatprep.subr.mxu0 0.0
      %438 = vmatpush1.msra.mxu0 0.0
      %439 = vmatprep.subr.mxu0 0.0
      %440 = vmatpush1.msra.mxu0 0.0
      %441 = vmatprep.subr.mxu0 0.0
      %442 = vmatpush1.msra.mxu0 0.0
      %443 = vmatprep.subr.mxu0 0.0
      %444 = vmatpush1.msra.mxu0 0.0
      %445 = vmatprep.subr.mxu0 0.0
      %446 = vmatpush1.msra.mxu0 0.0
      %447 = vmatprep.subr.mxu0 0.0
      %448 = vmatpush1.msra.mxu0 0.0
      %449 = vmatprep.subr.mxu0 0.0
      %450 = vmatpush1.msra.mxu0 0.0
      %451 = vmatprep.subr.mxu0 0.0
      %452 = vmatpush1.msra.mxu0 0.0
      %453 = vmatprep.subr.mxu0 0.0
      %454 = vmatpush1.msra.mxu0 0.0
      %455 = vmatprep.subr.mxu0 0.0
      %456 = vmatpush1.msra.mxu0 0.0
      %457 = vmatprep.subr.mxu0 0.0
      %458 = vmatpush1.msra.mxu0 0.0
      %459 = vmatprep.subr.mxu0 0.0
      %460 = vmatpush1.msra.mxu0 0.0
      %461 = vmatprep.subr.mxu0 0.0
      %462 = vmatpush1.msra.mxu0 0.0
      %463 = vmatprep.subr.mxu0 0.0
      %464 = vmatpush1.msra.mxu0 %v431
      %465 = vmatprep.subr.mxu0 0.0
      %466 = vmatpush2.msra.mxu0 0.0
      %467 = vmatprep.subr.mxu0 0.0
      %468 = vmatpush2.msra.mxu0 0.0
      %469 = vmatprep.subr.mxu0 0.0
      %470 = vmatpush2.msra.mxu0 0.0
      %471 = vmatprep.subr.mxu0 0.0
      %472 = vmatpush2.msra.mxu0 0.0
      %473 = vmatprep.subr.mxu0 0.0
      %474 = vmatpush2.msra.mxu0 0.0
      %475 = vmatprep.subr.mxu0 0.0
      %476 = vmatpush2.msra.mxu0 0.0
      %477 = vmatprep.subr.mxu0 0.0
      %478 = vmatpush2.msra.mxu0 0.0
      %479 = vmatprep.subr.mxu0 0.0
      %480 = vmatpush2.msra.mxu0 0.0
      %481 = vmatprep.subr.mxu0 0.0
      %482 = vmatpush2.msra.mxu0 0.0
      %483 = vmatprep.subr.mxu0 0.0
      %484 = vmatpush2.msra.mxu0 0.0
      %485 = vmatprep.subr.mxu0 0.0
      %486 = vmatpush2.msra.mxu0 0.0
      %487 = vmatprep.subr.mxu0 0.0
      %488 = vmatpush2.msra.mxu0 0.0
      %489 = vmatprep.subr.mxu0 0.0
      %490 = vmatpush2.msra.mxu0 0.0
      %491 = vmatprep.subr.mxu0 0.0
      %492 = vmatpush2.msra.mxu0 0.0
      %493 = vmatprep.subr.mxu0 0.0
      %494 = vmatpush2.msra.mxu0 0.0
      %495 = vmatprep.subr.mxu0 0.0
      %496 = vmatpush2.msra.mxu0 0.0
      %497 = vmatprep.mubr.f32.mxu0 0.0
      %498 = vmatmul.mubr.f32.gmra.mxu0 %v426
      %v499 = vpop.f32.mrf.mxu0
      %v500 = vadd.f32 %v413, %v499
      %v501 = vpop.f32.mrf.mxu0
      %502 = vmatprep.mubr.f32.mxu0 0.0
      %503 = vmatmul.mubr.f32.gmra.mxu0 %v428
      %v504 = vpop.f32.mrf.mxu0
      %v505 = vadd.f32 %v418, %v504
      %v506 = vpop.f32.mrf.mxu0
      %507 = vdwg.mxu0
      %s508 = scalar_lea.vmem %s1, 8
      %v509 = vld [vmem:[%s508] sm:$0xf]
      %v510 = vsel %vm324, %v315, 0
      %v512 = vsel %vm324, %v316, 0
      %v515 = vsel %vm342, %v509, 0
      %517 = vmatprep.subr.mxu0 0.0
      %518 = vmatpush1.msra.mxu0 0.0
      %519 = vmatprep.subr.mxu0 0.0
      %520 = vmatpush1.msra.mxu0 0.0
      %521 = vmatprep.subr.mxu0 0.0
      %522 = vmatpush1.msra.mxu0 0.0
      %523 = vmatprep.subr.mxu0 0.0
      %524 = vmatpush1.msra.mxu0 0.0
      %525 = vmatprep.subr.mxu0 0.0
      %526 = vmatpush1.msra.mxu0 0.0
      %527 = vmatprep.subr.mxu0 0.0
      %528 = vmatpush1.msra.mxu0 0.0
      %529 = vmatprep.subr.mxu0 0.0
      %530 = vmatpush1.msra.mxu0 0.0
      %531 = vmatprep.subr.mxu0 0.0
      %532 = vmatpush1.msra.mxu0 0.0
      %533 = vmatprep.subr.mxu0 0.0
      %534 = vmatpush1.msra.mxu0 0.0
      %535 = vmatprep.subr.mxu0 0.0
      %536 = vmatpush1.msra.mxu0 0.0
      %537 = vmatprep.subr.mxu0 0.0
      %538 = vmatpush1.msra.mxu0 0.0
      %539 = vmatprep.subr.mxu0 0.0
      %540 = vmatpush1.msra.mxu0 0.0
      %541 = vmatprep.subr.mxu0 0.0
      %542 = vmatpush1.msra.mxu0 0.0
      %543 = vmatprep.subr.mxu0 0.0
      %544 = vmatpush1.msra.mxu0 0.0
      %545 = vmatprep.subr.mxu0 0.0
      %546 = vmatpush1.msra.mxu0 0.0
      %547 = vmatprep.subr.mxu0 0.0
      %548 = vmatpush1.msra.mxu0 %v515
      %549 = vmatprep.subr.mxu0 0.0
      %550 = vmatpush2.msra.mxu0 0.0
      %551 = vmatprep.subr.mxu0 0.0
      %552 = vmatpush2.msra.mxu0 0.0
      %553 = vmatprep.subr.mxu0 0.0
      %554 = vmatpush2.msra.mxu0 0.0
      %555 = vmatprep.subr.mxu0 0.0
      %556 = vmatpush2.msra.mxu0 0.0
      %557 = vmatprep.subr.mxu0 0.0
      %558 = vmatpush2.msra.mxu0 0.0
      %559 = vmatprep.subr.mxu0 0.0
      %560 = vmatpush2.msra.mxu0 0.0
      %561 = vmatprep.subr.mxu0 0.0
      %562 = vmatpush2.msra.mxu0 0.0
      %563 = vmatprep.subr.mxu0 0.0
      %564 = vmatpush2.msra.mxu0 0.0
      %565 = vmatprep.subr.mxu0 0.0
      %566 = vmatpush2.msra.mxu0 0.0
      %567 = vmatprep.subr.mxu0 0.0
      %568 = vmatpush2.msra.mxu0 0.0
      %569 = vmatprep.subr.mxu0 0.0
      %570 = vmatpush2.msra.mxu0 0.0
      %571 = vmatprep.subr.mxu0 0.0
      %572 = vmatpush2.msra.mxu0 0.0
      %573 = vmatprep.subr.mxu0 0.0
      %574 = vmatpush2.msra.mxu0 0.0
      %575 = vmatprep.subr.mxu0 0.0
      %576 = vmatpush2.msra.mxu0 0.0
      %577 = vmatprep.subr.mxu0 0.0
      %578 = vmatpush2.msra.mxu0 0.0
      %579 = vmatprep.subr.mxu0 0.0
      %580 = vmatpush2.msra.mxu0 0.0
      %581 = vmatprep.mubr.f32.mxu0 0.0
      %582 = vmatmul.mubr.f32.gmra.mxu0 %v510
      %v583 = vpop.f32.mrf.mxu0
      %v584 = vadd.f32 0.0, %v583
      %v585 = vpop.f32.mrf.mxu0
      %586 = vmatprep.mubr.f32.mxu0 0.0
      %587 = vmatmul.mubr.f32.gmra.mxu0 %v512
      %v588 = vpop.f32.mrf.mxu0
      %v589 = vadd.f32 0.0, %v588
      %v590 = vpop.f32.mrf.mxu0
      %591 = vdwg.mxu0
      %v592 = vadd.f32 %v500, %v584
      %v593 = vadd.f32 %v505, %v589
      %v594 = vld [vmem:[%s2] sm:$0x1]
      %v596 = vlaneseq
      %v597 = vshrl.u32 %v596, 7
      %v598 = vsub.s32 0, %v597
      %v599 = vrot.slane %v594, %v598
      %v601 = vadd.f32 %v592, %v599
      %v602 = vadd.f32 %v593, %v599
      %v603 = vtanh.pop %v601
      %v604 = vtanh.pop %v602
      %v605 = vld [vmem:[%s3] sm:$0xff]
      %v606 = vld [vmem:[%s4] sm:$0x1]
      %v608 = vlaneseq
      %v609 = vshrl.u32 %v608, 7
      %v610 = vsub.s32 0, %v609
      %v611 = vrot.slane %v606, %v610
      %vm613 = vcmask 64512
      %v615 = vsel %vm613, %v603, 0
      %v618 = vsel %vm613, %v604, 0
      %620 = vmatprep.subr.mxu0 0.0
      %621 = vmatpush1.msra.mxu0 0.0
      %622 = vmatprep.subr.mxu0 0.0
      %623 = vmatpush1.msra.mxu0 0.0
      %624 = vmatprep.subr.mxu0 0.0
      %625 = vmatpush1.msra.mxu0 0.0
      %626 = vmatprep.subr.mxu0 0.0
      %627 = vmatpush1.msra.mxu0 0.0
      %628 = vmatprep.subr.mxu0 0.0
      %629 = vmatpush1.msra.mxu0 0.0
      %630 = vmatprep.subr.mxu0 0.0
      %631 = vmatpush1.msra.mxu0 0.0
      %632 = vmatprep.subr.mxu0 0.0
      %633 = vmatpush1.msra.mxu0 0.0
      %634 = vmatprep.subr.mxu0 0.0
      %635 = vmatpush1.msra.mxu0 0.0
      %636 = vmatprep.subr.mxu0 0.0
      %637 = vmatpush1.msra.mxu0 0.0
      %638 = vmatprep.subr.mxu0 0.0
      %639 = vmatpush1.msra.mxu0 0.0
      %640 = vmatprep.subr.mxu0 0.0
      %641 = vmatpush1.msra.mxu0 0.0
      %642 = vmatprep.subr.mxu0 0.0
      %643 = vmatpush1.msra.mxu0 0.0
      %644 = vmatprep.subr.mxu0 0.0
      %645 = vmatpush1.msra.mxu0 0.0
      %646 = vmatprep.subr.mxu0 0.0
      %647 = vmatpush1.msra.mxu0 0.0
      %648 = vmatprep.subr.mxu0 0.0
      %649 = vmatpush1.msra.mxu0 0.0
      %650 = vmatprep.subr.mxu0 0.0
      %651 = vmatpush1.msra.mxu0 %v605
      %652 = vmatprep.subr.mxu0 0.0
      %653 = vmatpush2.msra.mxu0 0.0
      %654 = vmatprep.subr.mxu0 0.0
      %655 = vmatpush2.msra.mxu0 0.0
      %656 = vmatprep.subr.mxu0 0.0
      %657 = vmatpush2.msra.mxu0 0.0
      %658 = vmatprep.subr.mxu0 0.0
      %659 = vmatpush2.msra.mxu0 0.0
      %660 = vmatprep.subr.mxu0 0.0
      %661 = vmatpush2.msra.mxu0 0.0
      %662 = vmatprep.subr.mxu0 0.0
      %663 = vmatpush2.msra.mxu0 0.0
      %664 = vmatprep.subr.mxu0 0.0
      %665 = vmatpush2.msra.mxu0 0.0
      %666 = vmatprep.subr.mxu0 0.0
      %667 = vmatpush2.msra.mxu0 0.0
      %668 = vmatprep.subr.mxu0 0.0
      %669 = vmatpush2.msra.mxu0 0.0
      %670 = vmatprep.subr.mxu0 0.0
      %671 = vmatpush2.msra.mxu0 0.0
      %672 = vmatprep.subr.mxu0 0.0
      %673 = vmatpush2.msra.mxu0 0.0
      %674 = vmatprep.subr.mxu0 0.0
      %675 = vmatpush2.msra.mxu0 0.0
      %676 = vmatprep.subr.mxu0 0.0
      %677 = vmatpush2.msra.mxu0 0.0
      %678 = vmatprep.subr.mxu0 0.0
      %679 = vmatpush2.msra.mxu0 0.0
      %680 = vmatprep.subr.mxu0 0.0
      %681 = vmatpush2.msra.mxu0 0.0
      %682 = vmatprep.subr.mxu0 0.0
      %683 = vmatpush2.msra.mxu0 0.0
      %684 = vmatprep.mubr.f32.mxu0 0.0
      %685 = vmatmul.mubr.f32.gmra.mxu0 %v615
      %v686 = vpop.f32.mrf.mxu0
      %v687 = vadd.f32 %v611, %v686
      %v688 = vpop.f32.mrf.mxu0
      %689 = vmatprep.mubr.f32.mxu0 0.0
      %690 = vmatmul.mubr.f32.gmra.mxu0 %v618
      %v691 = vpop.f32.mrf.mxu0
      %v692 = vadd.f32 %v611, %v691
      %v693 = vpop.f32.mrf.mxu0
      %694 = vdwg.mxu0
      %v695 = vadd.f32 %v687, %v315
      %v696 = vadd.f32 %v692, %v316
      %697 = vst.msk [vmem:[%s303] sm:$0xff] %vm324, %v695
      %698 = vst.msk [vmem:[%s303 + $0x8] sm:$0xff] %vm324, %v696
      %701 = vrot.lane.b32.xlu0 %v687, 124
      %v702 = vpop.permute.xlu0 %701
      %703 = vrot.lane.b32.xlu0 %v692, 124
      %v704 = vpop.permute.xlu0 %703
      %707 = vst.msk [vmem:[%s313] sm:$0xff] %vm324, %v702
      %708 = vst.msk [vmem:[%s313 + $0x8] sm:$0xff] %vm324, %v704
      %s709 = smul.u32 2, %s23
      %p710 = scmp.lt.s32.totalorder %s22, 1
      %s711 = scalar_select %p710, %s22, 1
      %p712 = scmp.lt.s32.totalorder %s709, 1
      %s713 = scalar_select %p712, %s709, 1
      %s714 = smul.addr %s711, 2
      %s715 = sadd.s32 %s713, %s714
      %s716 = smul.addr %s715, 8
      %s717 = scalar_lea.vmem %s5, %s716
      %s718 = smul.u32 2, %s23
      %p719 = scmp.lt.s32.totalorder %s22, 1
      %s720 = scalar_select %p719, %s22, 1
      %p721 = scmp.lt.s32.totalorder %s718, 1
      %s722 = scalar_select %p721, %s718, 1
      %s723 = smul.addr %s720, 2
      %s724 = sadd.s32 %s722, %s723
      %s725 = smul.addr %s724, 8
      %s726 = scalar_lea.vmem %s6, %s725
      // Predicated region
      $region45: #{tpu_custom_call.1} parent=39 // pred_check
        %p727 = pneg %p162
      $region46: #{tpu_custom_call.1} parent=39 // pred_check_branch
        %729 = sbr.rel (%p727) target = $region48
      $region47: #{tpu_custom_call.1} parent=39 // pred_region
        %s730 = smul.u32 2, %s23
      $region48: #{tpu_custom_call.1} parent=39 // pred_fallthru
        _
      // Predicated region
      $region49: #{tpu_custom_call.1} parent=39 // pred_check
        %p731 = pneg %p190
      $region50: #{tpu_custom_call.1} parent=39 // pred_check_branch
        %733 = sbr.rel (%p731) target = $region52
      $region51: #{tpu_custom_call.1} parent=39 // pred_region
        %s734 = smul.u32 2, %s23
      $region52: #{tpu_custom_call.1} parent=39 // pred_fallthru
        _
    $region40: #{tpu_custom_call.1} parent=5 // pred_fallthru
      _
    %p735 = scmp.le.s32.totalorder 2, %s13
    // Predicated region
    $region53: #{tpu_custom_call.1} parent=5 // pred_check
      %p736 = pneg %p735
    $region54: #{tpu_custom_call.1} parent=5 // pred_check_branch
      %738 = sbr.rel (%p736) target = $region56
    $region55: #{tpu_custom_call.1} parent=5 // pred_region
      %s739 = ssub.s32 %s13, 2
      // Predicated region
      $region57: #{tpu_custom_call.1} parent=55 // pred_check
        %p740 = pneg %p168
      $region58: #{tpu_custom_call.1} parent=55 // pred_check_branch
        %742 = sbr.rel (%p740) target = $region60
      $region59: #{tpu_custom_call.1} parent=55 // pred_region
        %s743 = smul.u32 2, %s25
        %p744 = scmp.lt.s32.totalorder %s24, 1
        %s745 = scalar_select %p744, %s24, 1
        %p746 = scmp.lt.s32.totalorder %s743, 1
        %s747 = scalar_select %p746, %s743, 1
        %s748 = smul.addr %s745, 2
        %s749 = sadd.s32 %s747, %s748
        %s750 = smul.addr %s749, 8
        %s751 = scalar_lea.vmem %s5, %s750
      $region60: #{tpu_custom_call.1} parent=55 // pred_fallthru
        _
      // Predicated region
      $region61: #{tpu_custom_call.1} parent=55 // pred_check
        %p752 = pneg %p196
      $region62: #{tpu_custom_call.1} parent=55 // pred_check_branch
        %754 = sbr.rel (%p752) target = $region64
      $region63: #{tpu_custom_call.1} parent=55 // pred_region
        %s755 = smul.u32 2, %s25
        %p756 = scmp.lt.s32.totalorder %s24, 1
        %s757 = scalar_select %p756, %s24, 1
        %p758 = scmp.lt.s32.totalorder %s755, 1
        %s759 = scalar_select %p758, %s755, 1
        %s760 = smul.addr %s757, 2
        %s761 = sadd.s32 %s759, %s760
        %s762 = smul.addr %s761, 8
        %s763 = scalar_lea.vmem %s6, %s762
      $region64: #{tpu_custom_call.1} parent=55 // pred_fallthru
        _
    $region56: #{tpu_custom_call.1} parent=5 // pred_fallthru
      _
  $region6: #{tpu_custom_call.1} parent=0 // loop_footer
    %s17 = sadd.s32 1, %s13
  $region7: #{tpu_custom_call.1} parent=0 // loop_footer_branch
    %12 = sbr.rel target = $region3
  $region8: #{tpu_custom_call.1} parent=0 // loop_exit
    _

</llo_original>
